<compile_context>
chip_gen: v7x
topology: tpu7x:2x2x1
jax: 0.10.0
libtpu: 0.0.40
codegen_flags: <defaults>
</compile_context>

<pallas_src>
import jax
import jax.numpy as jnp
import numpy as np
from jax.experimental import pallas as pl
from jax.experimental.pallas import tpu as pltpu

_LANES = 128              # TPU lane width: last dim maps to lanes
_MAX_BLOCK_ROWS = 2048    # 2048x128 f32 = 1 MiB per block; 2x(in+out) buffers = 4 MiB
_AUTO_KERNEL_MIN_N = 1 << 20  # below ~1M elements the fused XLA sigmoid is strictly faster


def _round_up(x, m):
    return ((x + m - 1) // m) * m


def _sigmoid_kernel(w_ref, o_ref):
    # Purely elementwise; safe with masked (ragged) last block.
    o_ref[...] = jax.nn.sigmoid(w_ref[...])


def _sigmoid_pallas_2d(w2d, block_rows):
    rows, lanes = w2d.shape
    grid = (pl.cdiv(rows, block_rows),)  # ragged last block is masked by Pallas
    return pl.pallas_call(
        _sigmoid_kernel,
        out_shape=jax.ShapeDtypeStruct((rows, lanes), w2d.dtype),
        grid_spec=pl.GridSpec(
            grid=grid,
            in_specs=[pl.BlockSpec((block_rows, lanes), lambda i: (i, 0))],
            out_specs=pl.BlockSpec((block_rows, lanes), lambda i: (i, 0)),
        ),
        compiler_params=pltpu.CompilerParams(
            # Independent elementwise blocks -> shard across TensorCores on v7x;
            # harmless no-op on single-TC v5e/v6e or when grid=(1,).
            dimension_semantics=("parallel",),
        ),
    )(w2d)


def laplacian_filter_forward(filter_weights, eigenvals=None, *, use_pallas=None):
    """Pallas/JAX equivalent of LaplacianFilter.forward.

    `eigenvals` is accepted for API parity but (like the PyTorch module) is unused —
    the forward simply returns sigmoid(filter_weights).

    use_pallas:
      None  -> auto: Pallas kernel only when n is large enough to amortize launch/DMA
               overhead (~1M elements); otherwise fused XLA sigmoid.
      True  -> force the Pallas kernel path (used for testing).
      False -> force the plain-JAX path.
    """
    n = filter_weights.shape[0]
    if use_pallas is None:
        use_pallas = n >= _AUTO_KERNEL_MIN_N
    if not use_pallas:
        return jax.nn.sigmoid(filter_weights)

    # --- lane-dense (rows, 128) view; pad only to the next 128-multiple if needed ---
    rows = pl.cdiv(n, _LANES)
    padded_n = rows * _LANES

    w = filter_weights
    if padded_n != n:
        # <= 127 zeros; sigmoid(0)=0.5 lands only in the tail that is sliced off below.
        w = jnp.pad(w, (0, padded_n - n))
    w2d = w.reshape(rows, _LANES)  # metadata-only reshape of a contiguous buffer

    # Block selection: big enough to hide per-step overhead, small enough for VMEM,
    # and guaranteeing >= 2 grid steps once rows >= 16 so v7x can use both cores.
    if rows >= 16:
        block_rows = min(_MAX_BLOCK_ROWS, _round_up(pl.cdiv(rows, 2), 8))
    else:
        block_rows = rows  # equals full row extent -> valid block shape, grid=(1,)

    out2d = _sigmoid_pallas_2d(w2d, block_rows)
    out = out2d.reshape(padded_n)
    if padded_n != n:
        out = out[:n]
    return out


def make_filter_weights(n_eigen, init_type="smooth", dtype=jnp.float32):
    """Deterministic parameter init mirroring LaplacianFilter.__init__."""
    i = np.arange(n_eigen, dtype=np.float64)
    if init_type == "smooth":
        w = np.exp(-i / (n_eigen / 4))
    elif init_type == "highpass":
        w = 1.0 - np.exp(-i / (n_eigen / 4))
    else:
        w = np.full(n_eigen, 0.5)
    return jnp.asarray(w, dtype=dtype)


if __name__ == "__main__":
    key = jax.random.PRNGKey(0)

    # --- small case matching the module's typical size: auto path = plain sigmoid ---
    n_small = 32
    w_small = make_filter_weights(n_small, init_type="smooth")
    eigenvals = jax.random.uniform(key, (n_small,), dtype=jnp.float32)  # unused, API parity

    out_fast = jax.block_until_ready(laplacian_filter_forward(w_small, eigenvals))
    np.testing.assert_allclose(
        np.asarray(out_fast), np.asarray(jax.nn.sigmoid(w_small)), rtol=1e-6, atol=1e-6
    )

    # Force the Pallas kernel on the small case (exercises the <=127-element pad + slice).
    out_kernel_small = jax.block_until_ready(
        laplacian_filter_forward(w_small, eigenvals, use_pallas=True)
    )
    np.testing.assert_allclose(
        np.asarray(out_kernel_small), np.asarray(jax.nn.sigmoid(w_small)),
        rtol=1e-6, atol=1e-6,
    )

    # --- 128-aligned case: no pad, no slice, metadata-only reshape, grid=(1,) ---
    n_med = 1024  # -> (8, 128) block, full vregs, unmasked stores
    w_med = make_filter_weights(n_med, init_type="highpass")
    out_kernel_med = jax.block_until_ready(
        laplacian_filter_forward(w_med, use_pallas=True)
    )
    np.testing.assert_allclose(
        np.asarray(out_kernel_med), np.asarray(jax.nn.sigmoid(w_med)),
        rtol=1e-6, atol=1e-6,
    )

    # --- 128-aligned case with a ragged last block and a 2-step grid ---
    n_big = 3072  # rows=24 -> block_rows=16, grid=(2,): second block masked to 8 rows
    w_big = make_filter_weights(n_big, init_type="flat")
    out_kernel_big = jax.block_until_ready(
        laplacian_filter_forward(w_big, use_pallas=True)
    )
    np.testing.assert_allclose(
        np.asarray(out_kernel_big), np.asarray(jax.nn.sigmoid(w_big)),
        rtol=1e-6, atol=1e-6,
    )

    print("KERNEL_OK")
</pallas_src>

<mosaic_0001>
module attributes {stable_mosaic.version = 11 : i64} {
  func.func @_sigmoid_kernel(%arg0: i32, %arg1: memref<1x128xf32, #tpu.memory_space<vmem>>, %arg2: memref<1x128xf32, #tpu.memory_space<vmem>>) attributes {dimension_semantics = [#tpu.dimension_semantics<parallel>], iteration_bounds = array<i64: 1>, scalar_prefetch = 0 : i64, scratch_operands = 0 : i64, tpu.core_type = #tpu.core_type<tc>, window_params = [{transform_indices = @transform_0, window_bounds = array<i64: 1, 128>}, {transform_indices = @transform_1, window_bounds = array<i64: 1, 128>}]} {
    %c0 = arith.constant 0 : index
    %c0_0 = arith.constant 0 : index
    %0 = vector.load %arg1[%c0, %c0_0] : memref<1x128xf32, #tpu.memory_space<vmem>>, vector<1x128xf32>
    %1 = arith.negf %0 : vector<1x128xf32>
    %2 = math.exp %1 : vector<1x128xf32>
    %cst = arith.constant 1.000000e+00 : f32
    %3 = vector.broadcast %cst : f32 to vector<1x128xf32>
    %4 = arith.addf %3, %2 : vector<1x128xf32>
    %5 = arith.divf %3, %4 : vector<1x128xf32>
    %c0_1 = arith.constant 0 : index
    %c0_2 = arith.constant 0 : index
    %6 = vector.load %arg2[%c0_1, %c0_2] : memref<1x128xf32, #tpu.memory_space<vmem>>, vector<1x128xf32>
    tpu.vector_store %arg2[%c0_1, %c0_2], %5 {strides = array<i32>} : memref<1x128xf32, #tpu.memory_space<vmem>>, vector<1x128xf32>,
    return
  }
  func.func @transform_0(%arg0: i32) -> (i32, i32) {
    %c0_i32 = arith.constant 0 : i32
    %c0_i32_0 = arith.constant 0 : i32
    return %arg0, %c0_i32 : i32, i32
  }
  func.func @transform_1(%arg0: i32) -> (i32, i32) {
    %c0_i32 = arith.constant 0 : i32
    %c0_i32_0 = arith.constant 0 : i32
    return %arg0, %c0_i32 : i32, i32
  }
}

</mosaic_0001>

<llo_original>
// kernel: tpu_custom_call.1
$region0: #{tpu_custom_call.1}
  #allocation0 [shape = 'u32[]', space=smem, size = 0x4, offset = 0x4, fixed_abs, tag = 'smem constant byte address 0x4 - core index']
  #allocation1 [shape = 'u32[144,128]{1,0:T(1,128)}', space=vmem, size = 0x12000, scoped, tag = 'internal scratch']
  %s0 = inlined_call_operand.hbm [shape: f32[1,128], index: 0, kind: input, shape index: {}]
  %s1 = inlined_call_operand.hbm [shape: f32[1,128], index: 1, kind: output, shape index: {}]
  %s2 = sld [smem:[#allocation0]]
  $region18: #{tpu_custom_call.1} parent=0
    _
  %s4 = ssub.s32 1, %s2
  %s5 = scalar_select 0, %s4, %s2
  $region1: #{tpu_custom_call.1} parent=0
    #allocation2 [shape = 'u8[512]{0}', space=vmem, size = 0x400, scoped, tag = 'input window, operand 0, single buffered']
    #allocation3 [shape = 's32[1]{0}', space=sflag, size = 0x4, scoped, tag = 'scoped memory for tpu_custom_call.1']
    #allocation4 [shape = 's32[1]{0}', space=sflag, size = 0x4, scoped, tag = 'scoped memory for tpu_custom_call.1']
    #allocation5 [shape = 'u8[512]{0}', space=vmem, size = 0x400, scoped, tag = 'output window, operand 0, single buffered']
    %6 = vsyncpa [#allocation3], 0
    %7 = vsyncpa [#allocation4], 0
    // Predicated region
    $region2: #{tpu_custom_call.1} parent=1 // pred_check
      _
    $region3: #{tpu_custom_call.1} parent=1 // pred_check_branch
      %9 = sbr.rel (0) target = $region5
    $region4: #{tpu_custom_call.1} parent=1 // pred_region
      %s11 = ssub.s32 16, 16
      %12 = vsyncadd [#allocation3], %s11
      %s14 = sshll.u32 [#allocation2], 4
      %s15 = int_to_ptr.vmem [resolvable:$true] %s14
      %17 = dma.hbm_to_vmem [thread:$0]  %s0, 16, %s15, [#allocation3]
    $region5: #{tpu_custom_call.1} parent=1 // pred_fallthru
      _
    // Predicated region
    $region6: #{tpu_custom_call.1} parent=1 // pred_check
      _
    $region7: #{tpu_custom_call.1} parent=1 // pred_check_branch
      %19 = sbr.rel (0) target = $region9
    $region8: #{tpu_custom_call.1} parent=1 // pred_region
      %20 = dma.done [#allocation3], 16
    $region9: #{tpu_custom_call.1} parent=1 // pred_fallthru
      _
    %v21 = vld [vmem:[#allocation2] sm:$0x1]
    %v22 = vxor.u32 %v21, 2147483648
    %v23 = vmul.f32 %v22, 1.442695
    %v24 = vpow.pop %v23
    %v25 = vadd.f32 %v24, 1.0
    %v26 = vrcp.pop %v25
    %v27 = vmul.f32 1.0, %v26
    %28 = vst [vmem:[#allocation5] sm:$0x1] %v27
    // Predicated region
    $region10: #{tpu_custom_call.1} parent=1 // pred_check
      _
    $region11: #{tpu_custom_call.1} parent=1 // pred_check_branch
      %30 = sbr.rel (0) target = $region13
    $region12: #{tpu_custom_call.1} parent=1 // pred_region
      %s32 = ssub.s32 16, 16
      %33 = vsyncadd [#allocation4], %s32
      %s35 = sshll.u32 [#allocation5], 4
      %s36 = int_to_ptr.vmem [resolvable:$true] %s35
      %38 = dma.vmem_to_hbm [thread:$0]  %s36, 16, %s1, [#allocation4]
    $region13: #{tpu_custom_call.1} parent=1 // pred_fallthru
      _
    // Predicated region
    $region14: #{tpu_custom_call.1} parent=1 // pred_check
      _
    $region15: #{tpu_custom_call.1} parent=1 // pred_check_branch
      %40 = sbr.rel (0) target = $region17
    $region16: #{tpu_custom_call.1} parent=1 // pred_region
      %41 = dma.done [#allocation4], 16
    $region17: #{tpu_custom_call.1} parent=1 // pred_fallthru
      _
    %42 = vsyncpa [#allocation3], 1
    %43 = vsyncpa [#allocation4], 1

</llo_original>
